<compile_context>
chip_gen: v6e
topology: v6e:2x2x1
jax: 0.10.0
libtpu: 0.0.40
codegen_flags: <defaults>
</compile_context>

<pallas_src>
import functools

import jax
import jax.numpy as jnp
from jax.experimental import pallas as pl
from jax.experimental.pallas import tpu as pltpu

_LANE = 128
_SUBLANE = 8


def _round_down(v, m):
    return (v // m) * m


def _dice_sums_kernel(x_ref, t_ref, o_ref, *, use_sigmoid, rows, block_rows,
                      mask_rows):
    """Accumulate per-lane [sum(x*t), sum(x), sum(t)] into the (3,128) output.

    The output block index is constant across the ("arbitrary") grid axis, so
    o_ref stays resident in VMEM for the whole sweep and is written back to
    HBM exactly once after the last step.
    """
    i = pl.program_id(0)

    @pl.when(i == 0)
    def _():
        o_ref[...] = jnp.zeros_like(o_ref)

    x = x_ref[...].astype(jnp.float32)          # native-dtype stream, VPU cast
    if use_sigmoid:
        x = jax.nn.sigmoid(x)
    t = t_ref[...].astype(jnp.float32)

    if mask_rows:
        # rows % block_rows != 0: the edge block's out-of-bounds rows are
        # undefined, so zero their contribution.  Branchless and negligible
        # next to the HBM stream (only emitted when statically needed).
        ridx = jax.lax.broadcasted_iota(jnp.int32, x.shape, 0)
        valid = (i * block_rows + ridx) < rows
        x = jnp.where(valid, x, 0.0)
        t = jnp.where(valid, t, 0.0)

    o_ref[0:1, :] += jnp.sum(x * t, axis=0, keepdims=True)   # intersection
    o_ref[1:2, :] += jnp.sum(x, axis=0, keepdims=True)       # sum(inputs)
    o_ref[2:3, :] += jnp.sum(t, axis=0, keepdims=True)       # sum(targets)


def _dice_small(x, t, smooth, use_sigmoid):
    """Fused-XLA fast path for tiny inputs (launch overhead dominates)."""
    x = x.astype(jnp.float32)
    t = t.astype(jnp.float32)
    if use_sigmoid:
        x = jax.nn.sigmoid(x)
    inter = jnp.sum(x * t)
    return (2.0 * inter + smooth) / (jnp.sum(x) + jnp.sum(t) + smooth)


def dice(inputs, targets, smooth=1.0, use_sigmoid=True, *,
         target_block_bytes=4 * 1024 * 1024, min_pallas_elems=65536):
    """Pallas TPU implementation of Dice.forward(inputs, targets, smooth)."""
    x = jnp.reshape(inputs, (-1,))
    t = jnp.reshape(targets, (-1,))
    if not jnp.issubdtype(x.dtype, jnp.floating):
        x = x.astype(jnp.float32)      # sigmoid needs float; rare path
    if not jnp.issubdtype(t.dtype, jnp.floating):
        t = t.astype(jnp.float32)
    n = x.shape[0]
    smooth = jnp.float32(smooth)

    # dtype-aware sublane packing: 8 rows f32, 16 bf16/f16, 32 int8/fp8.
    min_itemsize = min(x.dtype.itemsize, t.dtype.itemsize)
    max_itemsize = max(x.dtype.itemsize, t.dtype.itemsize)
    pack = _SUBLANE * max(1, 4 // max(1, min_itemsize))

    rows = n // _LANE

    # Small-input fast path: custom-call launch + final reduce dominate.
    if n < min_pallas_elems or rows < pack:
        return _dice_small(x, t, smooth, use_sigmoid)

    # Sub-128 flat-size remainder: tiny plain-JAX tail (no padded HBM copy of
    # the bulk; the prefix slice below is only taken when rem > 0).
    rem = n - rows * _LANE
    if rem:
        xt = x[rows * _LANE:].astype(jnp.float32)
        tt = t[rows * _LANE:].astype(jnp.float32)
        if use_sigmoid:
            xt = jax.nn.sigmoid(xt)
        tail = jnp.stack([jnp.sum(xt * tt), jnp.sum(xt), jnp.sum(tt)])
        x = x[: rows * _LANE]
        t = t[: rows * _LANE]
    else:
        tail = jnp.zeros((3,), jnp.float32)

    x2 = x.reshape(rows, _LANE)       # free bitcast-style reshape
    t2 = t.reshape(rows, _LANE)

    # Block rows: ~target_block_bytes for the widest stream, multiple of the
    # packing granularity, never exceeding the (packed-rounded-down) row count.
    br = target_block_bytes // (_LANE * max_itemsize)
    br = max(pack, _round_down(br, pack))
    br = min(br, _round_down(rows, pack))
    nb = pl.cdiv(rows, br)
    mask_rows = (rows % br) != 0

    main_elems = rows * _LANE
    cost = pl.CostEstimate(
        flops=6 * main_elems,
        transcendentals=(2 * main_elems) if use_sigmoid else 0,
        bytes_accessed=(x2.size * x2.dtype.itemsize
                        + t2.size * t2.dtype.itemsize
                        + 3 * _LANE * 4),
    )

    kernel = functools.partial(
        _dice_sums_kernel, use_sigmoid=use_sigmoid, rows=rows,
        block_rows=br, mask_rows=mask_rows)

    lane_sums = pl.pallas_call(
        kernel,
        out_shape=jax.ShapeDtypeStruct((3, _LANE), jnp.float32),
        grid_spec=pltpu.PrefetchScalarGridSpec(
            num_scalar_prefetch=0,
            grid=(nb,),
            in_specs=[
                pl.BlockSpec((br, _LANE), lambda i: (i, 0)),
                pl.BlockSpec((br, _LANE), lambda i: (i, 0)),
            ],
            out_specs=pl.BlockSpec((3, _LANE), lambda i: (0, 0)),
        ),
        compiler_params=pltpu.CompilerParams(
            dimension_semantics=("arbitrary",),
            vmem_limit_bytes=48 * 1024 * 1024,
        ),
        cost_estimate=cost,
    )(x2, t2)

    # Tiny cross-lane reduction + dice formula in plain JAX (384 floats).
    sums = jnp.sum(lane_sums, axis=1) + tail
    inter, sum_x, sum_t = sums[0], sums[1], sums[2]
    return (2.0 * inter + smooth) / (sum_x + sum_t + smooth)


def _dice_ref(inputs, targets, smooth=1.0, use_sigmoid=True):
    x = inputs.reshape(-1).astype(jnp.float32)
    t = targets.reshape(-1).astype(jnp.float32)
    if use_sigmoid:
        x = jax.nn.sigmoid(x)
    inter = jnp.sum(x * t)
    return (2.0 * inter + smooth) / (jnp.sum(x) + jnp.sum(t) + smooth)


if __name__ == "__main__":
    key = jax.random.PRNGKey(0)
    k1, k2, k3, k4, k5, k6, k7, k8 = jax.random.split(key, 8)

    def _check(out, ref):
        assert jnp.allclose(out, ref, rtol=1e-5, atol=1e-5), (out, ref)

    # Case 1: small NCHW logits/mask pair -> plain-JAX fast path.
    inputs = jax.random.normal(k1, (2, 4, 16, 16), dtype=jnp.float32)
    targets = (jax.random.uniform(k2, (2, 4, 16, 16)) > 0.5).astype(jnp.float32)
    out = jax.block_until_ready(dice(inputs, targets, smooth=1.0,
                                     use_sigmoid=True))
    _check(out, _dice_ref(inputs, targets))

    # Case 2: force the Pallas kernel with multiple blocks and a ragged last
    # block (rows=256, block_rows=96 -> grid of 3, in-kernel row masking).
    inputs2 = jax.random.normal(k3, (2, 4, 64, 64), dtype=jnp.float32)
    targets2 = (jax.random.uniform(k4, (2, 4, 64, 64)) > 0.5).astype(jnp.float32)
    out2 = jax.block_until_ready(dice(inputs2, targets2, smooth=1.0,
                                      use_sigmoid=True,
                                      target_block_bytes=96 * _LANE * 4,
                                      min_pallas_elems=0))
    _check(out2, _dice_ref(inputs2, targets2))

    # Case 3: bf16 streaming + flat size not divisible by 128 (sub-128 tail in
    # JAX, ragged rows masked in-kernel, 16-row packing for bf16).
    inputs3 = jax.random.normal(k5, (3, 5, 33, 33), dtype=jnp.bfloat16)
    targets3 = (jax.random.uniform(k6, (3, 5, 33, 33)) > 0.5).astype(jnp.bfloat16)
    out3 = jax.block_until_ready(dice(inputs3, targets3, smooth=1.0,
                                      use_sigmoid=True, min_pallas_elems=0))
    _check(out3, _dice_ref(inputs3, targets3))

    # Case 4: default settings, kernel path with a single large block.
    inputs4 = jax.random.normal(k7, (2, 4, 128, 128), dtype=jnp.float32)
    targets4 = (jax.random.uniform(k8, (2, 4, 128, 128)) > 0.5).astype(jnp.float32)
    out4 = jax.block_until_ready(dice(inputs4, targets4, smooth=1.0,
                                      use_sigmoid=True))
    _check(out4, _dice_ref(inputs4, targets4))

    print("KERNEL_OK")
</pallas_src>

<mosaic_0001>
module attributes {stable_mosaic.version = 11 : i64} {
  func.func @_dice_sums_kernel(%arg0: i32, %arg1: memref<96x128xf32, #tpu.memory_space<vmem>>, %arg2: memref<96x128xf32, #tpu.memory_space<vmem>>, %arg3: memref<3x128xf32, #tpu.memory_space<vmem>>) attributes {dimension_semantics = [#tpu.dimension_semantics<arbitrary>], iteration_bounds = array<i64: 3>, scalar_prefetch = 0 : i64, scratch_operands = 0 : i64, tpu.core_type = #tpu.core_type<tc>, window_params = [{transform_indices = @transform_0, window_bounds = array<i64: 96, 128>}, {transform_indices = @transform_1, window_bounds = array<i64: 96, 128>}, {pipeline_mode = #tpu.pipeline_mode<synchronous>, transform_indices = @transform_2, window_bounds = array<i64: 3, 128>}]} {
    %c0_i32 = arith.constant 0 : i32
    %0 = arith.cmpi eq, %arg0, %c0_i32 : i32
    %1 = arith.extui %0 : i1 to i32
    %c0_i32_0 = arith.constant 0 : i32
    %2 = arith.cmpi ne, %1, %c0_i32_0 : i32
    scf.if %2 {
      %cst_19 = arith.constant 0.000000e+00 : f32
      %36 = vector.broadcast %cst_19 : f32 to vector<3x128xf32>
      %c0_20 = arith.constant 0 : index
      %c0_21 = arith.constant 0 : index
      %37 = vector.load %arg3[%c0_20, %c0_21] : memref<3x128xf32, #tpu.memory_space<vmem>>, vector<3x128xf32>
      tpu.vector_store %arg3[%c0_20, %c0_21], %36 {strides = array<i32>} : memref<3x128xf32, #tpu.memory_space<vmem>>, vector<3x128xf32>,
    } else {
    }
    %c0 = arith.constant 0 : index
    %c0_1 = arith.constant 0 : index
    %3 = vector.load %arg1[%c0, %c0_1] : memref<96x128xf32, #tpu.memory_space<vmem>>, vector<96x128xf32>
    %4 = arith.negf %3 : vector<96x128xf32>
    %5 = math.exp %4 : vector<96x128xf32>
    %cst = arith.constant 1.000000e+00 : f32
    %6 = vector.broadcast %cst : f32 to vector<96x128xf32>
    %7 = arith.addf %6, %5 : vector<96x128xf32>
    %8 = arith.divf %6, %7 : vector<96x128xf32>
    %c0_2 = arith.constant 0 : index
    %c0_3 = arith.constant 0 : index
    %9 = vector.load %arg2[%c0_2, %c0_3] : memref<96x128xf32, #tpu.memory_space<vmem>>, vector<96x128xf32>
    %10 = tpu.iota {dimensions = array<i32: 0>} : vector<96x128xi32>
    %c96_i32 = arith.constant 96 : i32
    %11 = arith.muli %arg0, %c96_i32 : i32
    %12 = vector.broadcast %11 : i32 to vector<96x128xi32>
    %13 = arith.addi %12, %10 : vector<96x128xi32>
    %c256_i32 = arith.constant 256 : i32
    %14 = vector.broadcast %c256_i32 : i32 to vector<96x128xi32>
    %15 = arith.cmpi slt, %13, %14 : vector<96x128xi32>
    %cst_4 = arith.constant 0.000000e+00 : f32
    %16 = vector.broadcast %cst_4 : f32 to vector<96x128xf32>
    %17 = arith.select %15, %8, %16 : vector<96x128xi1>, vector<96x128xf32>
    %cst_5 = arith.constant 0.000000e+00 : f32
    %18 = vector.broadcast %cst_5 : f32 to vector<96x128xf32>
    %19 = arith.select %15, %9, %18 : vector<96x128xi1>, vector<96x128xf32>
    %c0_6 = arith.constant 0 : index
    %c0_7 = arith.constant 0 : index
    %20 = vector.load %arg3[%c0_6, %c0_7] : memref<3x128xf32, #tpu.memory_space<vmem>>, vector<1x128xf32>
    %21 = arith.mulf %17, %19 : vector<96x128xf32>
    %cst_8 = arith.constant dense<0.000000e+00> : vector<128xf32>
    %22 = vector.multi_reduction <add>, %21, %cst_8 [0] : vector<96x128xf32> to vector<128xf32>
    %23 = vector.shape_cast %22 : vector<128xf32> to vector<1x128xf32>
    %24 = arith.addf %20, %23 : vector<1x128xf32>
    %c0_9 = arith.constant 0 : index
    %c0_10 = arith.constant 0 : index
    %25 = vector.load %arg3[%c0_9, %c0_10] : memref<3x128xf32, #tpu.memory_space<vmem>>, vector<1x128xf32>
    tpu.vector_store %arg3[%c0_9, %c0_10], %24 {strides = array<i32>} : memref<3x128xf32, #tpu.memory_space<vmem>>, vector<1x128xf32>,
    %c1 = arith.constant 1 : index
    %c0_11 = arith.constant 0 : index
    %26 = vector.load %arg3[%c1, %c0_11] : memref<3x128xf32, #tpu.memory_space<vmem>>, vector<1x128xf32>
    %cst_12 = arith.constant dense<0.000000e+00> : vector<128xf32>
    %27 = vector.multi_reduction <add>, %17, %cst_12 [0] : vector<96x128xf32> to vector<128xf32>
    %28 = vector.shape_cast %27 : vector<128xf32> to vector<1x128xf32>
    %29 = arith.addf %26, %28 : vector<1x128xf32>
    %c1_13 = arith.constant 1 : index
    %c0_14 = arith.constant 0 : index
    %30 = vector.load %arg3[%c1_13, %c0_14] : memref<3x128xf32, #tpu.memory_space<vmem>>, vector<1x128xf32>
    tpu.vector_store %arg3[%c1_13, %c0_14], %29 {strides = array<i32>} : memref<3x128xf32, #tpu.memory_space<vmem>>, vector<1x128xf32>,
    %c2 = arith.constant 2 : index
    %c0_15 = arith.constant 0 : index
    %31 = vector.load %arg3[%c2, %c0_15] : memref<3x128xf32, #tpu.memory_space<vmem>>, vector<1x128xf32>
    %cst_16 = arith.constant dense<0.000000e+00> : vector<128xf32>
    %32 = vector.multi_reduction <add>, %19, %cst_16 [0] : vector<96x128xf32> to vector<128xf32>
    %33 = vector.shape_cast %32 : vector<128xf32> to vector<1x128xf32>
    %34 = arith.addf %31, %33 : vector<1x128xf32>
    %c2_17 = arith.constant 2 : index
    %c0_18 = arith.constant 0 : index
    %35 = vector.load %arg3[%c2_17, %c0_18] : memref<3x128xf32, #tpu.memory_space<vmem>>, vector<1x128xf32>
    tpu.vector_store %arg3[%c2_17, %c0_18], %34 {strides = array<i32>} : memref<3x128xf32, #tpu.memory_space<vmem>>, vector<1x128xf32>,
    return
  }
  func.func @transform_0(%arg0: i32) -> (i32, i32) {
    %c0_i32 = arith.constant 0 : i32
    %c0_i32_0 = arith.constant 0 : i32
    return %arg0, %c0_i32 : i32, i32
  }
  func.func @transform_1(%arg0: i32) -> (i32, i32) {
    %c0_i32 = arith.constant 0 : i32
    %c0_i32_0 = arith.constant 0 : i32
    return %arg0, %c0_i32 : i32, i32
  }
  func.func @transform_2(%arg0: i32) -> (i32, i32) {
    %c0_i32 = arith.constant 0 : i32
    %c0_i32_0 = arith.constant 0 : i32
    %c0_i32_1 = arith.constant 0 : i32
    return %c0_i32, %c0_i32_0 : i32, i32
  }
}

</mosaic_0001>

<llo_original>
// kernel: tpu_custom_call.1
$region0: #{tpu_custom_call.1}
  #allocation0 [shape = 'u32[]', space=smem, size = 0x4, offset = 0x4, fixed_abs, tag = 'smem constant byte address 0x4 - core index']
  #allocation1 [shape = 'u32[144,128]{1,0:T(1,128)}', space=vmem, size = 0x12000, scoped, tag = 'internal scratch']
  %s0 = inlined_call_operand.hbm [shape: f32[256,128], index: 0, kind: input, shape index: {}]
  %s1 = inlined_call_operand.hbm [shape: f32[256,128], index: 1, kind: input, shape index: {}]
  %s2 = inlined_call_operand.hbm [shape: f32[3,128], index: 2, kind: output, shape index: {}]
  %s3 = sld [smem:[#allocation0]]
  $region53: #{tpu_custom_call.1} parent=0
    _
  %s5 = ssub.s32 1, %s3
  %s6 = scalar_select 0, %s5, %s3
  $region1: #{tpu_custom_call.1} parent=0
    #allocation2 [shape = 'u8[98304]{0}', space=vmem, size = 0x18000, scoped, tag = 'input window, operand 0']
    #allocation3 [shape = 's32[2]{0}', space=sflag, size = 0x8, scoped, tag = 'scoped memory for tpu_custom_call.1']
    #allocation4 [shape = 's32[2]{0}', space=sflag, size = 0x8, scoped, tag = 'scoped memory for tpu_custom_call.1']
    #allocation5 [shape = 'u8[98304]{0}', space=vmem, size = 0x18000, scoped, tag = 'input window, operand 1']
    #allocation6 [shape = 's32[2]{0}', space=sflag, size = 0x8, scoped, tag = 'scoped memory for tpu_custom_call.1']
    #allocation7 [shape = 'u8[2048]{0}', space=vmem, size = 0x800, scoped, tag = 'output window, operand 0, single buffered']
    %7 = vsyncpa [#allocation3], 0
    %s8 = scalar_lea.sflag [#allocation3], 1
    %9 = vsyncpa %s8, 0
    %10 = vsyncpa [#allocation6], 0
    %s11 = scalar_lea.sflag [#allocation6], 1
    %12 = vsyncpa %s11, 0
    %13 = vsyncpa [#allocation4], 0
    loop: start=0, step=1, limit=5
    $region2: #{tpu_custom_call.1} parent=1 // loop_pre_header
      _
    $region3: #{tpu_custom_call.1} parent=1 // loop_header
      %s15 = sphi 0, %s19
      %p16 = scmp.ge.s32.totalorder %s15, 5
      %s25 = sphi 0, %s27
      %s28 = sphi 0, %s25
      %s29 = sphi 0, %s28
      %s45 = sphi 0, %s29
      %s51 = sphi 0, %s53
      %s54 = sphi 0, %s51
      %s55 = sphi 0, %s54
      %s71 = sphi 0, %s55
      %s75 = sphi 0, %s75
      %s77 = sphi 0, %s75
      %s78 = sphi 0, %s77
      %s92 = sphi 0, %s78
    $region4: #{tpu_custom_call.1} parent=1 // loop_header_branch
      %18 = sbr.rel (%p16) target = $region8
    $region5: #{tpu_custom_call.1} parent=1 // loop_body
      %s20 = ssub.s32 %s15, 1
      %s21 = ssub.s32 %s15, 2
      %s22 = sadd.s32 %s15, 1
      %s23 = ssub.s32 %s15, %s22
      %p24 = scmp.eq.s32.totalorder %s23, 0
      %s26 = sadd.s32 %s25, 1
      %s27 = scalar_select %p24, %s25, %s26
      %p30 = pneg %p24
      %p31 = scmp.eq.s32.totalorder %s15, 2
      %p32 = por %p30, %p31
      %p33 = scmp.ne.s32.totalorder %s25, %s28
      %p34 = scmp.eq.s32.totalorder %s15, 0
      %p35 = por %p33, %p34
      %p36 = scmp.ne.s32.totalorder %s25, %s28
      %p37 = scmp.eq.s32.totalorder %s20, 2
      %p38 = por %p36, %p37
      %p39 = scmp.ne.s32.totalorder %s28, %s29
      %p40 = scmp.eq.s32.totalorder %s20, 0
      %p41 = por %p39, %p40
      %p42 = scmp.ne.s32.totalorder %s28, %s29
      %p43 = scmp.eq.s32.totalorder %s21, 2
      %p44 = por %p42, %p43
      %p46 = scmp.ne.s32.totalorder %s29, %s45
      %p47 = scmp.eq.s32.totalorder %s21, 0
      %p48 = por %p46, %p47
      %s49 = ssub.s32 %s15, %s22
      %p50 = scmp.eq.s32.totalorder %s49, 0
      %s52 = sadd.s32 %s51, 1
      %s53 = scalar_select %p50, %s51, %s52
      %p56 = pneg %p50
      %p57 = scmp.eq.s32.totalorder %s15, 2
      %p58 = por %p56, %p57
      %p59 = scmp.ne.s32.totalorder %s51, %s54
      %p60 = scmp.eq.s32.totalorder %s15, 0
      %p61 = por %p59, %p60
      %p62 = scmp.ne.s32.totalorder %s51, %s54
      %p63 = scmp.eq.s32.totalorder %s20, 2
      %p64 = por %p62, %p63
      %p65 = scmp.ne.s32.totalorder %s54, %s55
      %p66 = scmp.eq.s32.totalorder %s20, 0
      %p67 = por %p65, %p66
      %p68 = scmp.ne.s32.totalorder %s54, %s55
      %p69 = scmp.eq.s32.totalorder %s21, 2
      %p70 = por %p68, %p69
      %p72 = scmp.ne.s32.totalorder %s55, %s71
      %p73 = scmp.eq.s32.totalorder %s21, 0
      %p74 = por %p72, %p73
      %s76 = sadd.s32 %s75, 1
      %p79 = scmp.eq.s32.totalorder %s15, 2
      %p80 = scmp.ne.s32.totalorder %s75, %s77
      %p81 = scmp.eq.s32.totalorder %s15, 0
      %p82 = por %p80, %p81
      %p83 = scmp.ne.s32.totalorder %s75, %s77
      %p84 = scmp.eq.s32.totalorder %s20, 2
      %p85 = por %p83, %p84
      %p86 = scmp.ne.s32.totalorder %s77, %s78
      %p87 = scmp.eq.s32.totalorder %s20, 0
      %p88 = por %p86, %p87
      %p89 = scmp.ne.s32.totalorder %s77, %s78
      %p90 = scmp.eq.s32.totalorder %s21, 2
      %p91 = por %p89, %p90
      %p93 = scmp.ne.s32.totalorder %s78, %s92
      %p94 = scmp.eq.s32.totalorder %s21, 0
      %p95 = por %p93, %p94
      %p96 = scmp.le.s32.totalorder 1, %s15
      %p97 = scmp.lt.s32.totalorder %s15, 4
      %p98 = pnand %p96, %p97
      %p99 = pneg %p98
      // Predicated region
      $region9: #{tpu_custom_call.1} parent=5 // pred_check
        _
      $region10: #{tpu_custom_call.1} parent=5 // pred_check_branch
        %101 = sbr.rel (%p98) target = $region12
      $region11: #{tpu_custom_call.1} parent=5 // pred_region
        %s102 = ssub.s32 %s15, 1
      $region12: #{tpu_custom_call.1} parent=5 // pred_fallthru
        _
      %p103 = scmp.lt.s32.totalorder %s15, 3
      // Predicated region
      $region13: #{tpu_custom_call.1} parent=5 // pred_check
        %p104 = pneg %p103
      $region14: #{tpu_custom_call.1} parent=5 // pred_check_branch
        %106 = sbr.rel (%p104) target = $region16
      $region15: #{tpu_custom_call.1} parent=5 // pred_region
        // Predicated region
        $region17: #{tpu_custom_call.1} parent=15 // pred_check
          %p107 = pneg %p35
        $region18: #{tpu_custom_call.1} parent=15 // pred_check_branch
          %109 = sbr.rel (%p107) target = $region20
        $region19: #{tpu_custom_call.1} parent=15 // pred_region
          %s110 = sand.u32 %s25, 1
          %s111 = scalar_lea.sflag [#allocation3], %s110
          %s112 = sand.u32 %s25, 1
          %s113 = smul.addr %s112, 96
          %s114 = scalar_lea.vmem [#allocation2], %s113
          %s115 = smul.u32 12, %s15
          %s116 = ssub.s32 32, %s115
          %p117 = scmp.lt.s32.totalorder %s116, 12
          %s118 = scalar_select %p117, %s116, 12
          %s119 = smul.u32 128, %s118
          %s121 = ssub.s32 1536, %s119
          %122 = vsyncadd %s111, %s121
          %p123 = scmp.ne.s32.totalorder 0, %s119
          %s124 = smul.addr %s115, 128
          %s125 = scalar_lea.hbm %s0, %s124
          %s126 = smul.u32 8, %s118
          %s127 = sshll.u32 %s114, 4
          %s128 = int_to_ptr.vmem [resolvable:$true] %s127
          %s129 = sshll.u32 %s126, 4
          %133 = dma.hbm_to_vmem [thread:$0]  (%p123), %s125, %s129, %s128, %s111, 128, 128, 8
        $region20: #{tpu_custom_call.1} parent=15 // pred_fallthru
          _
        // Predicated region
        $region21: #{tpu_custom_call.1} parent=15 // pred_check
          %p134 = pneg %p61
        $region22: #{tpu_custom_call.1} parent=15 // pred_check_branch
          %136 = sbr.rel (%p134) target = $region24
        $region23: #{tpu_custom_call.1} parent=15 // pred_region
          %s137 = sand.u32 %s51, 1
          %s138 = scalar_lea.sflag [#allocation6], %s137
          %s139 = sand.u32 %s51, 1
          %s140 = smul.addr %s139, 96
          %s141 = scalar_lea.vmem [#allocation5], %s140
          %s142 = smul.u32 12, %s15
          %s143 = ssub.s32 32, %s142
          %p144 = scmp.lt.s32.totalorder %s143, 12
          %s145 = scalar_select %p144, %s143, 12
          %s146 = smul.u32 128, %s145
          %s148 = ssub.s32 1536, %s146
          %149 = vsyncadd %s138, %s148
          %p150 = scmp.ne.s32.totalorder 0, %s146
          %s151 = smul.addr %s142, 128
          %s152 = scalar_lea.hbm %s1, %s151
          %s153 = smul.u32 8, %s145
          %s154 = sshll.u32 %s141, 4
          %s155 = int_to_ptr.vmem [resolvable:$true] %s154
          %s156 = sshll.u32 %s153, 4
          %160 = dma.hbm_to_vmem [thread:$0]  (%p150), %s152, %s156, %s155, %s138, 128, 128, 8
        $region24: #{tpu_custom_call.1} parent=15 // pred_fallthru
          _
      $region16: #{tpu_custom_call.1} parent=5 // pred_fallthru
        _
      %p161 = scmp.le.s32.totalorder 1, %s15
      %p162 = scmp.lt.s32.totalorder %s15, 4
      %p163 = pnand %p161, %p162
      %p164 = pneg %p163
      // Predicated region
      $region25: #{tpu_custom_call.1} parent=5 // pred_check
        _
      $region26: #{tpu_custom_call.1} parent=5 // pred_check_branch
        %166 = sbr.rel (%p163) target = $region28
      $region27: #{tpu_custom_call.1} parent=5 // pred_region
        %s167 = ssub.s32 %s15, 1
        %s168 = sand.u32 %s28, 1
        %s169 = scalar_lea.sflag [#allocation3], %s168
        %s170 = sand.u32 %s28, 1
        %s171 = smul.addr %s170, 96
        %s172 = scalar_lea.vmem [#allocation2], %s171
        // Predicated region
        $region29: #{tpu_custom_call.1} parent=27 // pred_check
          %p173 = pneg %p41
        $region30: #{tpu_custom_call.1} parent=27 // pred_check_branch
          %175 = sbr.rel (%p173) target = $region32
        $region31: #{tpu_custom_call.1} parent=27 // pred_region
          %176 = dma.done %s169, 1536
        $region32: #{tpu_custom_call.1} parent=27 // pred_fallthru
          _
        %s177 = sand.u32 %s54, 1
        %s178 = scalar_lea.sflag [#allocation6], %s177
        %s179 = sand.u32 %s54, 1
        %s180 = smul.addr %s179, 96
        %s181 = scalar_lea.vmem [#allocation5], %s180
        // Predicated region
        $region33: #{tpu_custom_call.1} parent=27 // pred_check
          %p182 = pneg %p67
        $region34: #{tpu_custom_call.1} parent=27 // pred_check_branch
          %184 = sbr.rel (%p182) target = $region36
        $region35: #{tpu_custom_call.1} parent=27 // pred_region
          %185 = dma.done %s178, 1536
        $region36: #{tpu_custom_call.1} parent=27 // pred_fallthru
          _
        %s186 = sand.u32 %s28, 1
        %s187 = scalar_lea.sflag [#allocation3], %s186
        %s188 = sand.u32 %s28, 1
        %s189 = smul.addr %s188, 96
        %s190 = scalar_lea.vmem [#allocation2], %s189
        %p191 = pneg %p41
        %p192 = pneg %p38
        %s193 = sand.u32 %s54, 1
        %s194 = scalar_lea.sflag [#allocation6], %s193
        %s195 = sand.u32 %s54, 1
        %s196 = smul.addr %s195, 96
        %s197 = scalar_lea.vmem [#allocation5], %s196
        %p198 = pneg %p67
        %p199 = pneg %p64
        %p200 = pneg %p88
        %p201 = pneg %p85
        %s202 = smul.u32 12, %s20
        %s203 = ssub.s32 32, %s202
        %p204 = scmp.lt.s32.totalorder %s203, 12
        %s205 = scalar_select %p204, %s203, 12
        %s206 = smul.u32 128, %s205
        %s207 = smul.u32 12, %s20
        %s208 = ssub.s32 32, %s207
        %p209 = scmp.lt.s32.totalorder %s208, 12
        %s210 = scalar_select %p209, %s208, 12
        %s211 = smul.u32 128, %s210
        %p212 = scmp.eq.s32.totalorder %s20, 0
        // Predicated region
        $region37: #{tpu_custom_call.1} parent=27 // pred_check
          %p213 = pneg %p212
        $region38: #{tpu_custom_call.1} parent=27 // pred_check_branch
          %215 = sbr.rel (%p213) target = $region40
        $region39: #{tpu_custom_call.1} parent=27 // pred_region
          %216 = vst [vmem:[#allocation7] sm:$0x7] 0.0
        $region40: #{tpu_custom_call.1} parent=27 // pred_fallthru
          _
        %v217 = vld [vmem:[%s172] sm:$0xff]
        %v218 = vld [vmem:[%s172 + $0x8] sm:$0xff]
        %v219 = vld [vmem:[%s172 + $0x10] sm:$0xff]
        %v220 = vld [vmem:[%s172 + $0x18] sm:$0xff]
        %v221 = vld [vmem:[%s172 + $0x20] sm:$0xff]
        %v222 = vld [vmem:[%s172 + $0x28] sm:$0xff]
        %v223 = vld [vmem:[%s172 + $0x30] sm:$0xff]
        %v224 = vld [vmem:[%s172 + $0x38] sm:$0xff]
        %v225 = vld [vmem:[%s172 + $0x40] sm:$0xff]
        %v226 = vld [vmem:[%s172 + $0x48] sm:$0xff]
        %v227 = vld [vmem:[%s172 + $0x50] sm:$0xff]
        %v228 = vld [vmem:[%s172 + $0x58] sm:$0xff]
        %v229 = vxor.u32 %v217, 2147483648
        %v230 = vxor.u32 %v218, 2147483648
        %v231 = vxor.u32 %v219, 2147483648
        %v232 = vxor.u32 %v220, 2147483648
        %v233 = vxor.u32 %v221, 2147483648
        %v234 = vxor.u32 %v222, 2147483648
        %v235 = vxor.u32 %v223, 2147483648
        %v236 = vxor.u32 %v224, 2147483648
        %v237 = vxor.u32 %v225, 2147483648
        %v238 = vxor.u32 %v226, 2147483648
        %v239 = vxor.u32 %v227, 2147483648
        %v240 = vxor.u32 %v228, 2147483648
        %v241 = vmul.f32 %v229, 1.442695
        %v242 = vpow.pop %v241
        %v243 = vmul.f32 %v230, 1.442695
        %v244 = vpow.pop %v243
        %v245 = vmul.f32 %v231, 1.442695
        %v246 = vpow.pop %v245
        %v247 = vmul.f32 %v232, 1.442695
        %v248 = vpow.pop %v247
        %v249 = vmul.f32 %v233, 1.442695
        %v250 = vpow.pop %v249
        %v251 = vmul.f32 %v234, 1.442695
        %v252 = vpow.pop %v251
        %v253 = vmul.f32 %v235, 1.442695
        %v254 = vpow.pop %v253
        %v255 = vmul.f32 %v236, 1.442695
        %v256 = vpow.pop %v255
        %v257 = vmul.f32 %v237, 1.442695
        %v258 = vpow.pop %v257
        %v259 = vmul.f32 %v238, 1.442695
        %v260 = vpow.pop %v259
        %v261 = vmul.f32 %v239, 1.442695
        %v262 = vpow.pop %v261
        %v263 = vmul.f32 %v240, 1.442695
        %v264 = vpow.pop %v263
        %v265 = vadd.f32 %v242, 1.0
        %v266 = vadd.f32 %v244, 1.0
        %v267 = vadd.f32 %v246, 1.0
        %v268 = vadd.f32 %v248, 1.0
        %v269 = vadd.f32 %v250, 1.0
        %v270 = vadd.f32 %v252, 1.0
        %v271 = vadd.f32 %v254, 1.0
        %v272 = vadd.f32 %v256, 1.0
        %v273 = vadd.f32 %v258, 1.0
        %v274 = vadd.f32 %v260, 1.0
        %v275 = vadd.f32 %v262, 1.0
        %v276 = vadd.f32 %v264, 1.0
        %v277 = vrcp.pop %v265
        %v278 = vmul.f32 1.0, %v277
        %v279 = vrcp.pop %v266
        %v280 = vmul.f32 1.0, %v279
        %v281 = vrcp.pop %v267
        %v282 = vmul.f32 1.0, %v281
        %v283 = vrcp.pop %v268
        %v284 = vmul.f32 1.0, %v283
        %v285 = vrcp.pop %v269
        %v286 = vmul.f32 1.0, %v285
        %v287 = vrcp.pop %v270
        %v288 = vmul.f32 1.0, %v287
        %v289 = vrcp.pop %v271
        %v290 = vmul.f32 1.0, %v289
        %v291 = vrcp.pop %v272
        %v292 = vmul.f32 1.0, %v291
        %v293 = vrcp.pop %v273
        %v294 = vmul.f32 1.0, %v293
        %v295 = vrcp.pop %v274
        %v296 = vmul.f32 1.0, %v295
        %v297 = vrcp.pop %v275
        %v298 = vmul.f32 1.0, %v297
        %v299 = vrcp.pop %v276
        %v300 = vmul.f32 1.0, %v299
        %v301 = vld [vmem:[%s181] sm:$0xff]
        %v302 = vld [vmem:[%s181 + $0x8] sm:$0xff]
        %v303 = vld [vmem:[%s181 + $0x10] sm:$0xff]
        %v304 = vld [vmem:[%s181 + $0x18] sm:$0xff]
        %v305 = vld [vmem:[%s181 + $0x20] sm:$0xff]
        %v306 = vld [vmem:[%s181 + $0x28] sm:$0xff]
        %v307 = vld [vmem:[%s181 + $0x30] sm:$0xff]
        %v308 = vld [vmem:[%s181 + $0x38] sm:$0xff]
        %v309 = vld [vmem:[%s181 + $0x40] sm:$0xff]
        %v310 = vld [vmem:[%s181 + $0x48] sm:$0xff]
        %v311 = vld [vmem:[%s181 + $0x50] sm:$0xff]
        %v312 = vld [vmem:[%s181 + $0x58] sm:$0xff]
        %v313 = vlaneseq
        %v314 = vshrl.u32 %v313, 7
        %v315 = vadd.s32 %v314, 8
        %v316 = vadd.s32 %v314, 16
        %v317 = vadd.s32 %v314, 24
        %v318 = vadd.s32 %v314, 32
        %v319 = vadd.s32 %v314, 40
        %v320 = vadd.s32 %v314, 48
        %v321 = vadd.s32 %v314, 56
        %v322 = vadd.s32 %v314, 64
        %v323 = vadd.s32 %v314, 72
        %v324 = vadd.s32 %v314, 80
        %v325 = vadd.s32 %v314, 88
        %s326 = smul.u32 %s20, 96
        %v327 = vstv %s326
        %v328 = vadd.s32 %v327, %v314
        %v329 = vadd.s32 %v327, %v315
        %v330 = vadd.s32 %v327, %v316
        %v331 = vadd.s32 %v327, %v317
        %v332 = vadd.s32 %v327, %v318
        %v333 = vadd.s32 %v327, %v319
        %v334 = vadd.s32 %v327, %v320
        %v335 = vadd.s32 %v327, %v321
        %v336 = vadd.s32 %v327, %v322
        %v337 = vadd.s32 %v327, %v323
        %v338 = vadd.s32 %v327, %v324
        %v339 = vadd.s32 %v327, %v325
        %vm340 = vcmp.lt.s32.totalorder %v328, 256
        %vm341 = vcmp.lt.s32.totalorder %v329, 256
        %vm342 = vcmp.lt.s32.totalorder %v330, 256
        %vm343 = vcmp.lt.s32.totalorder %v331, 256
        %vm344 = vcmp.lt.s32.totalorder %v332, 256
        %vm345 = vcmp.lt.s32.totalorder %v333, 256
        %vm346 = vcmp.lt.s32.totalorder %v334, 256
        %vm347 = vcmp.lt.s32.totalorder %v335, 256
        %vm348 = vcmp.lt.s32.totalorder %v336, 256
        %vm349 = vcmp.lt.s32.totalorder %v337, 256
        %vm350 = vcmp.lt.s32.totalorder %v338, 256
        %vm351 = vcmp.lt.s32.totalorder %v339, 256
        %v352 = vsel %vm340, %v278, 0.0
        %v353 = vsel %vm341, %v280, 0.0
        %v354 = vsel %vm342, %v282, 0.0
        %v355 = vsel %vm343, %v284, 0.0
        %v356 = vsel %vm344, %v286, 0.0
        %v357 = vsel %vm345, %v288, 0.0
        %v358 = vsel %vm346, %v290, 0.0
        %v359 = vsel %vm347, %v292, 0.0
        %v360 = vsel %vm348, %v294, 0.0
        %v361 = vsel %vm349, %v296, 0.0
        %v362 = vsel %vm350, %v298, 0.0
        %v363 = vsel %vm351, %v300, 0.0
        %v364 = vsel %vm340, %v301, 0.0
        %v365 = vsel %vm341, %v302, 0.0
        %v366 = vsel %vm342, %v303, 0.0
        %v367 = vsel %vm343, %v304, 0.0
        %v368 = vsel %vm344, %v305, 0.0
        %v369 = vsel %vm345, %v306, 0.0
        %v370 = vsel %vm346, %v307, 0.0
        %v371 = vsel %vm347, %v308, 0.0
        %v372 = vsel %vm348, %v309, 0.0
        %v373 = vsel %vm349, %v310, 0.0
        %v374 = vsel %vm350, %v311, 0.0
        %v375 = vsel %vm351, %v312, 0.0
        %v376 = vld [vmem:[#allocation7] sm:$0x1]
        %v377 = vmul.f32 %v352, %v364
        %v378 = vmul.f32 %v353, %v365
        %v379 = vmul.f32 %v354, %v366
        %v380 = vmul.f32 %v355, %v367
        %v381 = vmul.f32 %v356, %v368
        %v382 = vmul.f32 %v357, %v369
        %v383 = vmul.f32 %v358, %v370
        %v384 = vmul.f32 %v359, %v371
        %v385 = vmul.f32 %v360, %v372
        %v386 = vmul.f32 %v361, %v373
        %v387 = vmul.f32 %v362, %v374
        %v388 = vmul.f32 %v363, %v375
        %v389 = vadd.f32 %v377, %v378
        %v390 = vadd.f32 %v389, %v379
        %v391 = vadd.f32 %v390, %v380
        %v392 = vadd.f32 %v391, %v381
        %v393 = vadd.f32 %v392, %v382
        %v394 = vadd.f32 %v393, %v383
        %v395 = vadd.f32 %v394, %v384
        %v396 = vadd.f32 %v395, %v385
        %v397 = vadd.f32 %v396, %v386
        %v398 = vadd.f32 %v397, %v387
        %v399 = vadd.f32 %v398, %v388
        %v400 = vrot.slane %v399, 4
        %v401 = vadd.f32 %v399, %v400
        %v402 = vrot.slane %v401, 2
        %v403 = vadd.f32 %v401, %v402
        %v404 = vrot.slane %v403, 1
        %v405 = vadd.f32 %v403, %v404
        %v406 = vadd.f32 %v376, %v405
        %407 = vst [vmem:[#allocation7] sm:$0x1] %v406
        %v408 = vld [vmem:[#allocation7 + $0x1] sm:$0x1]
        %v409 = vadd.f32 %v352, %v353
        %v410 = vadd.f32 %v409, %v354
        %v411 = vadd.f32 %v410, %v355
        %v412 = vadd.f32 %v411, %v356
        %v413 = vadd.f32 %v412, %v357
        %v414 = vadd.f32 %v413, %v358
        %v415 = vadd.f32 %v414, %v359
        %v416 = vadd.f32 %v415, %v360
        %v417 = vadd.f32 %v416, %v361
        %v418 = vadd.f32 %v417, %v362
        %v419 = vadd.f32 %v418, %v363
        %v420 = vrot.slane %v419, 4
        %v421 = vadd.f32 %v419, %v420
        %v422 = vrot.slane %v421, 2
        %v423 = vadd.f32 %v421, %v422
        %v424 = vrot.slane %v423, 1
        %v425 = vadd.f32 %v423, %v424
        %v426 = vadd.f32 %v408, %v425
        %427 = vst [vmem:[#allocation7 + $0x1] sm:$0x1] %v426
        %v428 = vld [vmem:[#allocation7 + $0x2] sm:$0x1]
        %v429 = vadd.f32 %v364, %v365
        %v430 = vadd.f32 %v429, %v366
        %v431 = vadd.f32 %v430, %v367
        %v432 = vadd.f32 %v431, %v368
        %v433 = vadd.f32 %v432, %v369
        %v434 = vadd.f32 %v433, %v370
        %v435 = vadd.f32 %v434, %v371
        %v436 = vadd.f32 %v435, %v372
        %v437 = vadd.f32 %v436, %v373
        %v438 = vadd.f32 %v437, %v374
        %v439 = vadd.f32 %v438, %v375
        %v440 = vrot.slane %v439, 4
        %v441 = vadd.f32 %v439, %v440
        %v442 = vrot.slane %v441, 2
        %v443 = vadd.f32 %v441, %v442
        %v444 = vrot.slane %v443, 1
        %v445 = vadd.f32 %v443, %v444
        %v446 = vadd.f32 %v428, %v445
        %447 = vst [vmem:[#allocation7 + $0x2] sm:$0x1] %v446
        // Predicated region
        $region41: #{tpu_custom_call.1} parent=27 // pred_check
          %p448 = pneg %p85
        $region42: #{tpu_custom_call.1} parent=27 // pred_check_branch
          %450 = sbr.rel (%p448) target = $region44
        $region43: #{tpu_custom_call.1} parent=27 // pred_region
          %s452 = ssub.s32 64, 64
          %453 = vsyncadd [#allocation4], %s452
          %s455 = sshll.u32 [#allocation7], 4
          %s456 = int_to_ptr.vmem [resolvable:$true] %s455
          %458 = dma.vmem_to_hbm [thread:$0]  %s456, 64, %s2, [#allocation4]
        $region44: #{tpu_custom_call.1} parent=27 // pred_fallthru
          _
        // Predicated region
        $region45: #{tpu_custom_call.1} parent=27 // pred_check
          %p459 = pneg %p85
        $region46: #{tpu_custom_call.1} parent=27 // pred_check_branch
          %461 = sbr.rel (%p459) target = $region48
        $region47: #{tpu_custom_call.1} parent=27 // pred_region
          %462 = dma.done [#allocation4], 64
        $region48: #{tpu_custom_call.1} parent=27 // pred_fallthru
          _
      $region28: #{tpu_custom_call.1} parent=5 // pred_fallthru
        _
      %p463 = scmp.le.s32.totalorder 2, %s15
      // Predicated region
      $region49: #{tpu_custom_call.1} parent=5 // pred_check
        %p464 = pneg %p463
      $region50: #{tpu_custom_call.1} parent=5 // pred_check_branch
        %466 = sbr.rel (%p464) target = $region52
      $region51: #{tpu_custom_call.1} parent=5 // pred_region
        %s467 = ssub.s32 %s15, 2
      $region52: #{tpu_custom_call.1} parent=5 // pred_fallthru
        _
    $region6: #{tpu_custom_call.1} parent=1 // loop_footer
      %s19 = sadd.s32 1, %s15
    $region7: #{tpu_custom_call.1} parent=1 // loop_footer_branch
      %14 = sbr.rel target = $region3
    $region8: #{tpu_custom_call.1} parent=1 // loop_exit
      _
    %468 = vsyncpa [#allocation3], 1
    %s469 = scalar_lea.sflag [#allocation3], 1
    %470 = vsyncpa %s469, 1
    %471 = vsyncpa [#allocation6], 1
    %s472 = scalar_lea.sflag [#allocation6], 1
    %473 = vsyncpa %s472, 1
    %474 = vsyncpa [#allocation4], 1
    %s475 = scalar_lea.sflag [#allocation4], 1
    %476 = vsyncpa %s475, 1

</llo_original>
